<compile_context>
chip_gen: v7x
topology: tpu7x:2x2x1
jax: 0.10.0
libtpu: 0.0.40
codegen_flags: <defaults>
</compile_context>

<pallas_src>
import functools

import jax
import jax.numpy as jnp
import numpy as np
from jax import lax
from jax.experimental import pallas as pl
from jax.experimental.pallas import tpu as pltpu

D_IN = 128
D_HID = 256
D_OUT = 128

BLOCK_B_CAP = 4096                    # fits every generation's VMEM (v7x: 64 MiB)
VMEM_LIMIT_BYTES = 48 * 1024 * 1024


def _round_up(x, m):
    return (x + m - 1) // m * m


def resmlp_kernel(x_ref, w1_ref, b1_ref, w2_ref, b2_ref, out_ref):
    """fc2(relu(fc1(x))) on one [block_b, D] slab: bf16 MXU matmuls, f32 accum."""
    x = x_ref[...].astype(jnp.bfloat16)                                # [bB, D_in]
    h = jnp.dot(x, w1_ref[...], preferred_element_type=jnp.float32)    # [bB, D_hid]
    h = jnp.maximum(h + b1_ref[...], 0.0)
    out = jnp.dot(h.astype(jnp.bfloat16), w2_ref[...],
                  preferred_element_type=jnp.float32)                  # [bB, D_out]
    out_ref[...] = (out + b2_ref[...]).astype(out_ref.dtype)


def init_params(key):
    """Deterministic synthetic parameters with PyTorch nn.Linear shapes."""
    ks = jax.random.split(key, 4)

    def nrm(k, shape, scale=0.05):
        return scale * jax.random.normal(k, shape, dtype=jnp.float32)

    return dict(
        fc1_w=nrm(ks[0], (D_HID, D_IN)),   # [out, in]  (PyTorch layout)
        fc1_b=nrm(ks[1], (D_HID,)),
        fc2_w=nrm(ks[2], (D_OUT, D_HID)),
        fc2_b=nrm(ks[3], (D_OUT,)),
    )


def prepare_params(params):
    """One-time preprocessing, hoisted out of the per-call forward:
    transpose PyTorch [out, in] weights to [in, out] and cast them to bf16 for
    the MXU; biases stay f32 (they add onto the f32 accumulator)."""
    return dict(
        w1=jnp.asarray(params['fc1_w']).T.astype(jnp.bfloat16),       # [D_in,  D_hid]
        b1=jnp.asarray(params['fc1_b']).reshape(1, -1).astype(jnp.float32),
        w2=jnp.asarray(params['fc2_w']).T.astype(jnp.bfloat16),       # [D_hid, D_out]
        b2=jnp.asarray(params['fc2_b']).reshape(1, -1).astype(jnp.float32),
    )


def _pick_block_b(batch):
    if batch <= BLOCK_B_CAP:
        return _round_up(batch, 8)
    # Large batch: at least 2 grid steps (keeps both v7x TCs busy), VMEM-capped.
    return min(BLOCK_B_CAP, _round_up(pl.cdiv(batch, 2), 8))


@functools.partial(jax.jit, static_argnames=("block_b",))
def resmlp_forward(x, prepped, *, block_b=None):
    """x: [B, D_in].  Returns [B, D_out] in x.dtype."""
    B, d_in = x.shape
    assert d_in == D_IN

    if block_b is None:
        block_b = _pick_block_b(B)

    # Only pad when a single block would exceed the batch (tiny pad, <8 rows,
    # small-B only).  Otherwise the last, partial block is handled by Pallas'
    # edge masking -- no full-array copy of x in front of a mem-bound kernel.
    if B < block_b:
        x = jnp.pad(x, ((0, block_b - B), (0, 0)))
    b_total = x.shape[0]
    n_blocks = pl.cdiv(b_total, block_b)

    flops = 2 * b_total * (D_IN * D_HID + D_HID * D_OUT)
    bytes_accessed = (x.size * x.dtype.itemsize
                      + b_total * D_OUT * x.dtype.itemsize
                      + prepped['w1'].size * 2 + prepped['w2'].size * 2
                      + (D_HID + D_OUT) * 4)

    out = pl.pallas_call(
        resmlp_kernel,
        out_shape=jax.ShapeDtypeStruct((b_total, D_OUT), x.dtype),
        grid_spec=pltpu.PrefetchScalarGridSpec(
            num_scalar_prefetch=0,
            grid=(n_blocks,),
            in_specs=[
                pl.BlockSpec((block_b, D_IN), lambda i: (i, 0)),   # x block
                pl.BlockSpec((D_IN, D_HID),   lambda i: (0, 0)),   # w1 (resident)
                pl.BlockSpec((1, D_HID),      lambda i: (0, 0)),   # b1 (resident)
                pl.BlockSpec((D_HID, D_OUT),  lambda i: (0, 0)),   # w2 (resident)
                pl.BlockSpec((1, D_OUT),      lambda i: (0, 0)),   # b2 (resident)
            ],
            out_specs=pl.BlockSpec((block_b, D_OUT), lambda i: (i, 0)),
        ),
        compiler_params=pltpu.CompilerParams(
            dimension_semantics=("parallel",),     # batch blocks are independent
            vmem_limit_bytes=VMEM_LIMIT_BYTES,
        ),
        cost_estimate=pl.CostEstimate(flops=flops, transcendentals=0,
                                      bytes_accessed=bytes_accessed),
    )(x, prepped['w1'], prepped['b1'], prepped['w2'], prepped['b2'])

    return out[:B]


def resmlp_reference(x, params):
    """Plain-JAX f32 reference mirroring the PyTorch forward exactly."""
    h = jnp.dot(x.astype(jnp.float32), params['fc1_w'].T,
                precision=lax.Precision.HIGHEST) + params['fc1_b']
    h = jnp.maximum(h, 0.0)
    h = jnp.dot(h, params['fc2_w'].T,
                precision=lax.Precision.HIGHEST) + params['fc2_b']
    return h


if __name__ == "__main__":
    key = jax.random.PRNGKey(0)
    kx, kp = jax.random.split(key)
    params = init_params(kp)
    prepped = prepare_params(params)   # one-time weight transpose + bf16 cast

    # Small demo batch: multiple of 8 but not of 128.
    B = 200
    x = jax.random.normal(kx, (B, D_IN), dtype=jnp.float32)
    ref = resmlp_reference(x, params)

    # Default path: single 200-row block, grid = 1.
    out = jax.block_until_ready(resmlp_forward(x, prepped))
    assert out.shape == (B, D_OUT)
    np.testing.assert_allclose(np.asarray(out), np.asarray(ref),
                               atol=2e-2, rtol=2e-2)

    # Multi-block path with a partial (masked) last block: grid = 2 @ 128 rows.
    out2 = jax.block_until_ready(resmlp_forward(x, prepped, block_b=128))
    np.testing.assert_allclose(np.asarray(out2), np.asarray(ref),
                               atol=2e-2, rtol=2e-2)

    print("KERNEL_OK")
</pallas_src>

<mosaic_0001>
module attributes {stable_mosaic.version = 11 : i64} {
  func.func @resmlp_kernel(%arg0: i32, %arg1: memref<200x128xf32, #tpu.memory_space<vmem>>, %arg2: memref<128x256xbf16, #tpu.memory_space<vmem>>, %arg3: memref<1x256xf32, #tpu.memory_space<vmem>>, %arg4: memref<256x128xbf16, #tpu.memory_space<vmem>>, %arg5: memref<1x128xf32, #tpu.memory_space<vmem>>, %arg6: memref<200x128xf32, #tpu.memory_space<vmem>>) attributes {dimension_semantics = [#tpu.dimension_semantics<parallel>], iteration_bounds = array<i64: 1>, scalar_prefetch = 0 : i64, scratch_operands = 0 : i64, tpu.core_type = #tpu.core_type<tc>, window_params = [{transform_indices = @transform_0, window_bounds = array<i64: 200, 128>}, {pipeline_mode = #tpu.pipeline_mode<synchronous>, transform_indices = @transform_1, window_bounds = array<i64: 128, 256>}, {pipeline_mode = #tpu.pipeline_mode<synchronous>, transform_indices = @transform_2, window_bounds = array<i64: 1, 256>}, {pipeline_mode = #tpu.pipeline_mode<synchronous>, transform_indices = @transform_3, window_bounds = array<i64: 256, 128>}, {pipeline_mode = #tpu.pipeline_mode<synchronous>, transform_indices = @transform_4, window_bounds = array<i64: 1, 128>}, {transform_indices = @transform_5, window_bounds = array<i64: 200, 128>}]} {
    %c0 = arith.constant 0 : index
    %c0_0 = arith.constant 0 : index
    %0 = vector.load %arg1[%c0, %c0_0] : memref<200x128xf32, #tpu.memory_space<vmem>>, vector<200x128xf32>
    %1 = arith.truncf %0 : vector<200x128xf32> to vector<200x128xbf16>
    %c0_1 = arith.constant 0 : index
    %c0_2 = arith.constant 0 : index
    %2 = vector.load %arg2[%c0_1, %c0_2] : memref<128x256xbf16, #tpu.memory_space<vmem>>, vector<128x256xbf16>
    %cst = arith.constant dense<0.000000e+00> : vector<200x256xf32>
    %3 = tpu.matmul %1, %2, %cst {dimension_numbers = #tpu.dot_dimension_numbers<[1], [0], [0], [1], [0, 0, 1, 1], [], []>} : vector<200x128xbf16>, vector<128x256xbf16>, vector<200x256xf32> -> vector<200x256xf32>
    %c0_3 = arith.constant 0 : index
    %c0_4 = arith.constant 0 : index
    %4 = vector.load %arg3[%c0_3, %c0_4] : memref<1x256xf32, #tpu.memory_space<vmem>>, vector<1x256xf32>
    %5 = vector.broadcast %4 : vector<1x256xf32> to vector<200x256xf32>
    %6 = arith.addf %3, %5 : vector<200x256xf32>
    %cst_5 = arith.constant 0.000000e+00 : f32
    %7 = vector.broadcast %cst_5 : f32 to vector<200x256xf32>
    %8 = arith.maximumf %6, %7 : vector<200x256xf32>
    %9 = arith.truncf %8 : vector<200x256xf32> to vector<200x256xbf16>
    %c0_6 = arith.constant 0 : index
    %c0_7 = arith.constant 0 : index
    %10 = vector.load %arg4[%c0_6, %c0_7] : memref<256x128xbf16, #tpu.memory_space<vmem>>, vector<256x128xbf16>
    %cst_8 = arith.constant dense<0.000000e+00> : vector<200x128xf32>
    %11 = tpu.matmul %9, %10, %cst_8 {dimension_numbers = #tpu.dot_dimension_numbers<[1], [0], [0], [1], [0, 0, 1, 1], [], []>} : vector<200x256xbf16>, vector<256x128xbf16>, vector<200x128xf32> -> vector<200x128xf32>
    %c0_9 = arith.constant 0 : index
    %c0_10 = arith.constant 0 : index
    %12 = vector.load %arg5[%c0_9, %c0_10] : memref<1x128xf32, #tpu.memory_space<vmem>>, vector<1x128xf32>
    %13 = vector.broadcast %12 : vector<1x128xf32> to vector<200x128xf32>
    %14 = arith.addf %11, %13 : vector<200x128xf32>
    %c0_11 = arith.constant 0 : index
    %c0_12 = arith.constant 0 : index
    %15 = vector.load %arg6[%c0_11, %c0_12] : memref<200x128xf32, #tpu.memory_space<vmem>>, vector<200x128xf32>
    tpu.vector_store %arg6[%c0_11, %c0_12], %14 {strides = array<i32>} : memref<200x128xf32, #tpu.memory_space<vmem>>, vector<200x128xf32>,
    return
  }
  func.func @transform_0(%arg0: i32) -> (i32, i32) {
    %c0_i32 = arith.constant 0 : i32
    %c0_i32_0 = arith.constant 0 : i32
    return %arg0, %c0_i32 : i32, i32
  }
  func.func @transform_1(%arg0: i32) -> (i32, i32) {
    %c0_i32 = arith.constant 0 : i32
    %c0_i32_0 = arith.constant 0 : i32
    %c0_i32_1 = arith.constant 0 : i32
    return %c0_i32, %c0_i32_0 : i32, i32
  }
  func.func @transform_2(%arg0: i32) -> (i32, i32) {
    %c0_i32 = arith.constant 0 : i32
    %c0_i32_0 = arith.constant 0 : i32
    %c0_i32_1 = arith.constant 0 : i32
    return %c0_i32, %c0_i32_0 : i32, i32
  }
  func.func @transform_3(%arg0: i32) -> (i32, i32) {
    %c0_i32 = arith.constant 0 : i32
    %c0_i32_0 = arith.constant 0 : i32
    %c0_i32_1 = arith.constant 0 : i32
    return %c0_i32, %c0_i32_0 : i32, i32
  }
  func.func @transform_4(%arg0: i32) -> (i32, i32) {
    %c0_i32 = arith.constant 0 : i32
    %c0_i32_0 = arith.constant 0 : i32
    %c0_i32_1 = arith.constant 0 : i32
    return %c0_i32, %c0_i32_0 : i32, i32
  }
  func.func @transform_5(%arg0: i32) -> (i32, i32) {
    %c0_i32 = arith.constant 0 : i32
    %c0_i32_0 = arith.constant 0 : i32
    return %arg0, %c0_i32 : i32, i32
  }
}

</mosaic_0001>

<llo_original>
// kernel: resmlp_forward.1
$region0: #{resmlp_forward.1}
  #allocation0 [shape = 'u32[]', space=smem, size = 0x4, offset = 0x4, fixed_abs, tag = 'smem constant byte address 0x4 - core index']
  #allocation1 [shape = 'u32[144,128]{1,0:T(1,128)}', space=vmem, size = 0x12000, scoped, tag = 'internal scratch']
  %s0 = inlined_call_operand.hbm [shape: f32[200,128], index: 0, kind: input, shape index: {}]
  %s1 = inlined_call_operand.hbm [shape: bf16[128,256], index: 1, kind: input, shape index: {}]
  %s2 = inlined_call_operand.vmem [shape: f32[1,256], index: 2, kind: input, shape index: {}]
  %s3 = inlined_call_operand.hbm [shape: bf16[256,128], index: 3, kind: input, shape index: {}]
  %s4 = inlined_call_operand.vmem [shape: f32[1,128], index: 4, kind: input, shape index: {}]
  %s5 = inlined_call_operand.hbm [shape: f32[200,128], index: 5, kind: output, shape index: {}]
  %s6 = sld [smem:[#allocation0]]
  $region42: #{resmlp_forward.1} parent=0
    _
  %s8 = ssub.s32 1, %s6
  %s9 = scalar_select 0, %s8, %s6
  $region1: #{resmlp_forward.1} parent=0
    #allocation2 [shape = 'u8[102400]{0}', space=vmem, size = 0x19000, scoped, tag = 'input window, operand 0, single buffered']
    #allocation3 [shape = 's32[1]{0}', space=sflag, size = 0x4, scoped, tag = 'scoped memory for resmlp_forward.1']
    #allocation4 [shape = 's32[1]{0}', space=sflag, size = 0x4, scoped, tag = 'scoped memory for resmlp_forward.1']
    #allocation5 [shape = 'u8[65536]{0}', space=vmem, size = 0x10000, scoped, tag = 'input window, operand 1, single buffered']
    #allocation6 [shape = 's32[1]{0}', space=sflag, size = 0x4, scoped, tag = 'scoped memory for resmlp_forward.1']
    #allocation7 [shape = 'u8[65536]{0}', space=vmem, size = 0x10000, scoped, tag = 'input window, operand 3, single buffered']
    #allocation8 [shape = 'u8[102400]{0}', space=vmem, size = 0x19000, scoped, tag = 'output window, operand 0, single buffered']
    %10 = vsyncpa [#allocation3], 0
    %11 = vsyncpa [#allocation6], 0
    %12 = vsyncpa [#allocation4], 0
    // Predicated region
    $region2: #{resmlp_forward.1} parent=1 // pred_check
      _
    $region3: #{resmlp_forward.1} parent=1 // pred_check_branch
      %14 = sbr.rel (0) target = $region5
    $region4: #{resmlp_forward.1} parent=1 // pred_region
      %s16 = ssub.s32 3200, 3200
      %17 = vsyncadd [#allocation3], %s16
      %s18 = sshll.u32 [#allocation2], 4
      %s19 = int_to_ptr.vmem [resolvable:$true] %s18
      %24 = dma.hbm_to_vmem [thread:$0]  %s0, 3200, %s19, [#allocation3], 128, 128, 8
    $region5: #{resmlp_forward.1} parent=1 // pred_fallthru
      _
    // Predicated region
    $region6: #{resmlp_forward.1} parent=1 // pred_check
      _
    $region7: #{resmlp_forward.1} parent=1 // pred_check_branch
      %26 = sbr.rel (0) target = $region9
    $region8: #{resmlp_forward.1} parent=1 // pred_region
      %s28 = ssub.s32 2048, 2048
      %29 = vsyncadd [#allocation6], %s28
      %s30 = sshll.u32 [#allocation5], 4
      %s31 = int_to_ptr.vmem [resolvable:$true] %s30
      %36 = dma.hbm_to_vmem [thread:$0]  %s1, 2048, %s31, [#allocation6], 128, 128, 8
    $region9: #{resmlp_forward.1} parent=1 // pred_fallthru
      _
    // Predicated region
    $region10: #{resmlp_forward.1} parent=1 // pred_check
      _
    $region11: #{resmlp_forward.1} parent=1 // pred_check_branch
      %38 = sbr.rel (0) target = $region13
    $region12: #{resmlp_forward.1} parent=1 // pred_region
      _
    $region13: #{resmlp_forward.1} parent=1 // pred_fallthru
      _
    // Predicated region
    $region14: #{resmlp_forward.1} parent=1 // pred_check
      _
    $region15: #{resmlp_forward.1} parent=1 // pred_check_branch
      %40 = sbr.rel (0) target = $region17
    $region16: #{resmlp_forward.1} parent=1 // pred_region
      %s42 = ssub.s32 2048, 2048
      %43 = vsyncadd [#allocation6], %s42
      %s44 = sshll.u32 [#allocation7], 4
      %s45 = int_to_ptr.vmem [resolvable:$true] %s44
      %50 = dma.hbm_to_vmem [thread:$0]  %s3, 2048, %s45, [#allocation6], 64, 64, 4
    $region17: #{resmlp_forward.1} parent=1 // pred_fallthru
      _
    // Predicated region
    $region18: #{resmlp_forward.1} parent=1 // pred_check
      _
    $region19: #{resmlp_forward.1} parent=1 // pred_check_branch
      %52 = sbr.rel (0) target = $region21
    $region20: #{resmlp_forward.1} parent=1 // pred_region
      _
    $region21: #{resmlp_forward.1} parent=1 // pred_fallthru
      _
    // Predicated region
    $region22: #{resmlp_forward.1} parent=1 // pred_check
      _
    $region23: #{resmlp_forward.1} parent=1 // pred_check_branch
      %54 = sbr.rel (0) target = $region25
    $region24: #{resmlp_forward.1} parent=1 // pred_region
      %55 = dma.done [#allocation3], 3200
    $region25: #{resmlp_forward.1} parent=1 // pred_fallthru
      _
    // Predicated region
    $region26: #{resmlp_forward.1} parent=1 // pred_check
      _
    $region27: #{resmlp_forward.1} parent=1 // pred_check_branch
      %57 = sbr.rel (0) target = $region29
    $region28: #{resmlp_forward.1} parent=1 // pred_region
      %58 = dma.done [#allocation6], 2048
    $region29: #{resmlp_forward.1} parent=1 // pred_fallthru
      _
    // Predicated region
    $region30: #{resmlp_forward.1} parent=1 // pred_check
      _
    $region31: #{resmlp_forward.1} parent=1 // pred_check_branch
      %60 = sbr.rel (0) target = $region33
    $region32: #{resmlp_forward.1} parent=1 // pred_region
      %61 = dma.done [#allocation6], 2048
    $region33: #{resmlp_forward.1} parent=1 // pred_fallthru
      _
    %v63 = vld [vmem:[#allocation2] sm:$0xff]
    %v64 = vld [vmem:[#allocation2 + $0x8] sm:$0xff]
    %v65 = vld [vmem:[#allocation2 + $0x10] sm:$0xff]
    %v66 = vld [vmem:[#allocation2 + $0x18] sm:$0xff]
    %v67 = vld [vmem:[#allocation2 + $0x20] sm:$0xff]
    %v68 = vld [vmem:[#allocation2 + $0x28] sm:$0xff]
    %v69 = vld [vmem:[#allocation2 + $0x30] sm:$0xff]
    %v70 = vld [vmem:[#allocation2 + $0x38] sm:$0xff]
    %v71 = vld [vmem:[#allocation2 + $0x40] sm:$0xff]
    %v72 = vld [vmem:[#allocation2 + $0x48] sm:$0xff]
    %v73 = vld [vmem:[#allocation2 + $0x50] sm:$0xff]
    %v74 = vld [vmem:[#allocation2 + $0x58] sm:$0xff]
    %v75 = vld [vmem:[#allocation2 + $0x60] sm:$0xff]
    %v76 = vld [vmem:[#allocation2 + $0x68] sm:$0xff]
    %v77 = vld [vmem:[#allocation2 + $0x70] sm:$0xff]
    %v78 = vld [vmem:[#allocation2 + $0x78] sm:$0xff]
    %v79 = vld [vmem:[#allocation2 + $0x80] sm:$0xff]
    %v80 = vld [vmem:[#allocation2 + $0x88] sm:$0xff]
    %v81 = vld [vmem:[#allocation2 + $0x90] sm:$0xff]
    %v82 = vld [vmem:[#allocation2 + $0x98] sm:$0xff]
    %v83 = vld [vmem:[#allocation2 + $0xa0] sm:$0xff]
    %v84 = vld [vmem:[#allocation2 + $0xa8] sm:$0xff]
    %v85 = vld [vmem:[#allocation2 + $0xb0] sm:$0xff]
    %v86 = vld [vmem:[#allocation2 + $0xb8] sm:$0xff]
    %v87 = vld [vmem:[#allocation2 + $0xc0] sm:$0xff]
    %v88 = vpack.c.bf16 %v64, %v63
    %v89 = vpack.c.bf16 %v66, %v65
    %v90 = vpack.c.bf16 %v68, %v67
    %v91 = vpack.c.bf16 %v70, %v69
    %v92 = vpack.c.bf16 %v72, %v71
    %v93 = vpack.c.bf16 %v74, %v73
    %v94 = vpack.c.bf16 %v76, %v75
    %v95 = vpack.c.bf16 %v78, %v77
    %v96 = vpack.c.bf16 %v80, %v79
    %v97 = vpack.c.bf16 %v82, %v81
    %v98 = vpack.c.bf16 %v84, %v83
    %v99 = vpack.c.bf16 %v86, %v85
    %v100 = vpack.c.bf16 %v87, %v87
    %v101 = vld [vmem:[#allocation5] sm:$0xff]
    %v102 = vld [vmem:[#allocation5 + $0x8] sm:$0xff]
    %v103 = vld [vmem:[#allocation5 + $0x10] sm:$0xff]
    %v104 = vld [vmem:[#allocation5 + $0x18] sm:$0xff]
    %v105 = vld [vmem:[#allocation5 + $0x20] sm:$0xff]
    %v106 = vld [vmem:[#allocation5 + $0x28] sm:$0xff]
    %v107 = vld [vmem:[#allocation5 + $0x30] sm:$0xff]
    %v108 = vld [vmem:[#allocation5 + $0x38] sm:$0xff]
    %v109 = vld [vmem:[#allocation5 + $0x40] sm:$0xff]
    %v110 = vld [vmem:[#allocation5 + $0x48] sm:$0xff]
    %v111 = vld [vmem:[#allocation5 + $0x50] sm:$0xff]
    %v112 = vld [vmem:[#allocation5 + $0x58] sm:$0xff]
    %v113 = vld [vmem:[#allocation5 + $0x60] sm:$0xff]
    %v114 = vld [vmem:[#allocation5 + $0x68] sm:$0xff]
    %v115 = vld [vmem:[#allocation5 + $0x70] sm:$0xff]
    %v116 = vld [vmem:[#allocation5 + $0x78] sm:$0xff]
    %v117 = vld [vmem:[%s2] sm:$0x3]
    %v119 = vlaneseq
    %v120 = vshrl.u32 %v119, 7
    %v121 = vsub.s32 0, %v120
    %v122 = vrot.slane %v117, %v121
    %v123 = vlaneseq
    %v124 = vshrl.u32 %v123, 7
    %v125 = vsub.s32 1, %v124
    %v126 = vrot.slane %v117, %v125
    %v145 = vunpack.c.l.b16 %v101
    %v146 = vunpack.c.h.b16 %v101
    %v147 = vunpack.c.l.b16 %v102
    %v148 = vunpack.c.h.b16 %v102
    %v149 = vunpack.c.l.b16 %v103
    %v150 = vunpack.c.h.b16 %v103
    %v151 = vunpack.c.l.b16 %v104
    %v152 = vunpack.c.h.b16 %v104
    %v153 = vunpack.c.l.b16 %v105
    %v154 = vunpack.c.h.b16 %v105
    %v155 = vunpack.c.l.b16 %v106
    %v156 = vunpack.c.h.b16 %v106
    %v157 = vunpack.c.l.b16 %v107
    %v158 = vunpack.c.h.b16 %v107
    %v159 = vunpack.c.l.b16 %v108
    %v160 = vunpack.c.h.b16 %v108
    %v161 = vunpack.c.l.b16 %v109
    %v162 = vunpack.c.h.b16 %v109
    %v163 = vunpack.c.l.b16 %v110
    %v164 = vunpack.c.h.b16 %v110
    %v165 = vunpack.c.l.b16 %v111
    %v166 = vunpack.c.h.b16 %v111
    %v167 = vunpack.c.l.b16 %v112
    %v168 = vunpack.c.h.b16 %v112
    %v169 = vunpack.c.l.b16 %v113
    %v170 = vunpack.c.h.b16 %v113
    %v171 = vunpack.c.l.b16 %v114
    %v172 = vunpack.c.h.b16 %v114
    %v173 = vunpack.c.l.b16 %v115
    %v174 = vunpack.c.h.b16 %v115
    %v175 = vunpack.c.l.b16 %v116
    %v176 = vunpack.c.h.b16 %v116
    %v177 = vpack.c.b16 %v147, %v145
    %v178 = vpack.c.b16 %v148, %v146
    %v179 = vpack.c.b16 %v151, %v149
    %v180 = vpack.c.b16 %v152, %v150
    %v181 = vpack.c.b16 %v155, %v153
    %v182 = vpack.c.b16 %v156, %v154
    %v183 = vpack.c.b16 %v159, %v157
    %v184 = vpack.c.b16 %v160, %v158
    %v185 = vpack.c.b16 %v163, %v161
    %v186 = vpack.c.b16 %v164, %v162
    %v187 = vpack.c.b16 %v167, %v165
    %v188 = vpack.c.b16 %v168, %v166
    %v189 = vpack.c.b16 %v171, %v169
    %v190 = vpack.c.b16 %v172, %v170
    %v191 = vpack.c.b16 %v175, %v173
    %v192 = vpack.c.b16 %v176, %v174
    %209 = vmatprep.subr.bf16.mxu0 %v178
    %210 = vmatpush1.bf16.msra.mxu0 %v177
    %211 = vmatprep.subr.bf16.mxu0 %v180
    %212 = vmatpush1.bf16.msra.mxu0 %v179
    %213 = vmatprep.subr.bf16.mxu0 %v182
    %214 = vmatpush1.bf16.msra.mxu0 %v181
    %215 = vmatprep.subr.bf16.mxu0 %v184
    %216 = vmatpush1.bf16.msra.mxu0 %v183
    %217 = vmatprep.subr.bf16.mxu0 %v186
    %218 = vmatpush1.bf16.msra.mxu0 %v185
    %219 = vmatprep.subr.bf16.mxu0 %v188
    %220 = vmatpush1.bf16.msra.mxu0 %v187
    %221 = vmatprep.subr.bf16.mxu0 %v190
    %222 = vmatpush1.bf16.msra.mxu0 %v189
    %223 = vmatprep.subr.bf16.mxu0 %v192
    %224 = vmatpush1.bf16.msra.mxu0 %v191
    %225 = vmatprep.subr.bf16.mxu0 0
    %226 = vmatpush1.bf16.msra.mxu0 0
    %227 = vmatprep.subr.bf16.mxu0 0
    %228 = vmatpush1.bf16.msra.mxu0 0
    %229 = vmatprep.subr.bf16.mxu0 0
    %230 = vmatpush1.bf16.msra.mxu0 0
    %231 = vmatprep.subr.bf16.mxu0 0
    %232 = vmatpush1.bf16.msra.mxu0 0
    %233 = vmatprep.subr.bf16.mxu0 0
    %234 = vmatpush1.bf16.msra.mxu0 0
    %235 = vmatprep.subr.bf16.mxu0 0
    %236 = vmatpush1.bf16.msra.mxu0 0
    %237 = vmatprep.subr.bf16.mxu0 0
    %238 = vmatpush1.bf16.msra.mxu0 0
    %239 = vmatprep.subr.bf16.mxu0 0
    %240 = vmatpush1.bf16.msra.mxu0 0
    %241 = vmatprep.mubr.bf16.mxu0 0
    %242 = vmatmul.mubr.bf16.gmra.mrb[0].mxu0 %v88
    %v243 = vpop.f32.mrb[0].mxu0
    %v244 = vadd.f32 %v122, %v243
    %v245 = vpop.f32.mrb[0].mxu0
    %v246 = vadd.f32 %v126, %v245
    %v247 = vpop.f32.mrb[0].mxu0
    %v248 = vadd.f32 %v122, %v247
    %v249 = vpop.f32.mrb[0].mxu0
    %v250 = vadd.f32 %v126, %v249
    %251 = vmatprep.mubr.bf16.mxu0 0
    %252 = vmatmul.mubr.bf16.gmra.mrb[0].mxu0 %v89
    %v253 = vpop.f32.mrb[0].mxu0
    %v254 = vadd.f32 %v122, %v253
    %v255 = vpop.f32.mrb[0].mxu0
    %v256 = vadd.f32 %v126, %v255
    %v257 = vpop.f32.mrb[0].mxu0
    %v258 = vadd.f32 %v122, %v257
    %v259 = vpop.f32.mrb[0].mxu0
    %v260 = vadd.f32 %v126, %v259
    %261 = vmatprep.mubr.bf16.mxu0 0
    %262 = vmatmul.mubr.bf16.gmra.mrb[0].mxu0 %v90
    %v263 = vpop.f32.mrb[0].mxu0
    %v264 = vadd.f32 %v122, %v263
    %v265 = vpop.f32.mrb[0].mxu0
    %v266 = vadd.f32 %v126, %v265
    %v267 = vpop.f32.mrb[0].mxu0
    %v268 = vadd.f32 %v122, %v267
    %v269 = vpop.f32.mrb[0].mxu0
    %v270 = vadd.f32 %v126, %v269
    %271 = vmatprep.mubr.bf16.mxu0 0
    %272 = vmatmul.mubr.bf16.gmra.mrb[0].mxu0 %v91
    %v273 = vpop.f32.mrb[0].mxu0
    %v274 = vadd.f32 %v122, %v273
    %v275 = vpop.f32.mrb[0].mxu0
    %v276 = vadd.f32 %v126, %v275
    %v277 = vpop.f32.mrb[0].mxu0
    %v278 = vadd.f32 %v122, %v277
    %v279 = vpop.f32.mrb[0].mxu0
    %v280 = vadd.f32 %v126, %v279
    %281 = vmatprep.mubr.bf16.mxu0 0
    %282 = vmatmul.mubr.bf16.gmra.mrb[0].mxu0 %v92
    %v283 = vpop.f32.mrb[0].mxu0
    %v284 = vadd.f32 %v122, %v283
    %v285 = vpop.f32.mrb[0].mxu0
    %v286 = vadd.f32 %v126, %v285
    %v287 = vpop.f32.mrb[0].mxu0
    %v288 = vadd.f32 %v122, %v287
    %v289 = vpop.f32.mrb[0].mxu0
    %v290 = vadd.f32 %v126, %v289
    %291 = vmatprep.mubr.bf16.mxu0 0
    %292 = vmatmul.mubr.bf16.gmra.mrb[0].mxu0 %v93
    %v293 = vpop.f32.mrb[0].mxu0
    %v294 = vadd.f32 %v122, %v293
    %v295 = vpop.f32.mrb[0].mxu0
    %v296 = vadd.f32 %v126, %v295
    %v297 = vpop.f32.mrb[0].mxu0
    %v298 = vadd.f32 %v122, %v297
    %v299 = vpop.f32.mrb[0].mxu0
    %v300 = vadd.f32 %v126, %v299
    %301 = vmatprep.mubr.bf16.mxu0 0
    %302 = vmatmul.mubr.bf16.gmra.mrb[0].mxu0 %v94
    %v303 = vpop.f32.mrb[0].mxu0
    %v304 = vadd.f32 %v122, %v303
    %v305 = vpop.f32.mrb[0].mxu0
    %v306 = vadd.f32 %v126, %v305
    %v307 = vpop.f32.mrb[0].mxu0
    %v308 = vadd.f32 %v122, %v307
    %v309 = vpop.f32.mrb[0].mxu0
    %v310 = vadd.f32 %v126, %v309
    %311 = vmatprep.mubr.bf16.mxu0 0
    %312 = vmatmul.mubr.bf16.gmra.mrb[0].mxu0 %v95
    %v313 = vpop.f32.mrb[0].mxu0
    %v314 = vadd.f32 %v122, %v313
    %v315 = vpop.f32.mrb[0].mxu0
    %v316 = vadd.f32 %v126, %v315
    %v317 = vpop.f32.mrb[0].mxu0
    %v318 = vadd.f32 %v122, %v317
    %v319 = vpop.f32.mrb[0].mxu0
    %v320 = vadd.f32 %v126, %v319
    %321 = vmatprep.mubr.bf16.mxu0 0
    %322 = vmatmul.mubr.bf16.gmra.mrb[0].mxu0 %v96
    %v323 = vpop.f32.mrb[0].mxu0
    %v324 = vadd.f32 %v122, %v323
    %v325 = vpop.f32.mrb[0].mxu0
    %v326 = vadd.f32 %v126, %v325
    %v327 = vpop.f32.mrb[0].mxu0
    %v328 = vadd.f32 %v122, %v327
    %v329 = vpop.f32.mrb[0].mxu0
    %v330 = vadd.f32 %v126, %v329
    %331 = vmatprep.mubr.bf16.mxu0 0
    %332 = vmatmul.mubr.bf16.gmra.mrb[0].mxu0 %v97
    %v333 = vpop.f32.mrb[0].mxu0
    %v334 = vadd.f32 %v122, %v333
    %v335 = vpop.f32.mrb[0].mxu0
    %v336 = vadd.f32 %v126, %v335
    %v337 = vpop.f32.mrb[0].mxu0
    %v338 = vadd.f32 %v122, %v337
    %v339 = vpop.f32.mrb[0].mxu0
    %v340 = vadd.f32 %v126, %v339
    %341 = vmatprep.mubr.bf16.mxu0 0
    %342 = vmatmul.mubr.bf16.gmra.mrb[0].mxu0 %v98
    %v343 = vpop.f32.mrb[0].mxu0
    %v344 = vadd.f32 %v122, %v343
    %v345 = vpop.f32.mrb[0].mxu0
    %v346 = vadd.f32 %v126, %v345
    %v347 = vpop.f32.mrb[0].mxu0
    %v348 = vadd.f32 %v122, %v347
    %v349 = vpop.f32.mrb[0].mxu0
    %v350 = vadd.f32 %v126, %v349
    %351 = vmatprep.mubr.bf16.mxu0 0
    %352 = vmatmul.mubr.bf16.gmra.mrb[0].mxu0 %v99
    %v353 = vpop.f32.mrb[0].mxu0
    %v354 = vadd.f32 %v122, %v353
    %v355 = vpop.f32.mrb[0].mxu0
    %v356 = vadd.f32 %v126, %v355
    %v357 = vpop.f32.mrb[0].mxu0
    %v358 = vadd.f32 %v122, %v357
    %v359 = vpop.f32.mrb[0].mxu0
    %v360 = vadd.f32 %v126, %v359
    %361 = vmatprep.mubr.bf16.mxu0 0
    %362 = vmatmul.mubr.bf16.gmra.mrb[0].mxu0 %v100
    %v363 = vpop.f32.mrb[0].mxu0
    %v364 = vadd.f32 %v122, %v363
    %v365 = vpop.f32.mrb[0].mxu0
    %v366 = vadd.f32 %v126, %v365
    %v367 = vpop.f32.mrb[0].mxu0
    %v368 = vpop.f32.mrb[0].mxu0
    %369 = vdwg.mxu0
    %v370 = vmax.f32 %v244, 0.0
    %v371 = vmax.f32 %v246, 0.0
    %v372 = vmax.f32 %v248, 0.0
    %v373 = vmax.f32 %v250, 0.0
    %v374 = vmax.f32 %v254, 0.0
    %v375 = vmax.f32 %v256, 0.0
    %v376 = vmax.f32 %v258, 0.0
    %v377 = vmax.f32 %v260, 0.0
    %v378 = vmax.f32 %v264, 0.0
    %v379 = vmax.f32 %v266, 0.0
    %v380 = vmax.f32 %v268, 0.0
    %v381 = vmax.f32 %v270, 0.0
    %v382 = vmax.f32 %v274, 0.0
    %v383 = vmax.f32 %v276, 0.0
    %v384 = vmax.f32 %v278, 0.0
    %v385 = vmax.f32 %v280, 0.0
    %v386 = vmax.f32 %v284, 0.0
    %v387 = vmax.f32 %v286, 0.0
    %v388 = vmax.f32 %v288, 0.0
    %v389 = vmax.f32 %v290, 0.0
    %v390 = vmax.f32 %v294, 0.0
    %v391 = vmax.f32 %v296, 0.0
    %v392 = vmax.f32 %v298, 0.0
    %v393 = vmax.f32 %v300, 0.0
    %v394 = vmax.f32 %v304, 0.0
    %v395 = vmax.f32 %v306, 0.0
    %v396 = vmax.f32 %v308, 0.0
    %v397 = vmax.f32 %v310, 0.0
    %v398 = vmax.f32 %v314, 0.0
    %v399 = vmax.f32 %v316, 0.0
    %v400 = vmax.f32 %v318, 0.0
    %v401 = vmax.f32 %v320, 0.0
    %v402 = vmax.f32 %v324, 0.0
    %v403 = vmax.f32 %v326, 0.0
    %v404 = vmax.f32 %v328, 0.0
    %v405 = vmax.f32 %v330, 0.0
    %v406 = vmax.f32 %v334, 0.0
    %v407 = vmax.f32 %v336, 0.0
    %v408 = vmax.f32 %v338, 0.0
    %v409 = vmax.f32 %v340, 0.0
    %v410 = vmax.f32 %v344, 0.0
    %v411 = vmax.f32 %v346, 0.0
    %v412 = vmax.f32 %v348, 0.0
    %v413 = vmax.f32 %v350, 0.0
    %v414 = vmax.f32 %v354, 0.0
    %v415 = vmax.f32 %v356, 0.0
    %v416 = vmax.f32 %v358, 0.0
    %v417 = vmax.f32 %v360, 0.0
    %v418 = vmax.f32 %v364, 0.0
    %v419 = vmax.f32 %v366, 0.0
    %v420 = vpack.c.bf16 %v372, %v370
    %v421 = vpack.c.bf16 %v373, %v371
    %v422 = vpack.c.bf16 %v376, %v374
    %v423 = vpack.c.bf16 %v377, %v375
    %v424 = vpack.c.bf16 %v380, %v378
    %v425 = vpack.c.bf16 %v381, %v379
    %v426 = vpack.c.bf16 %v384, %v382
    %v427 = vpack.c.bf16 %v385, %v383
    %v428 = vpack.c.bf16 %v388, %v386
    %v429 = vpack.c.bf16 %v389, %v387
    %v430 = vpack.c.bf16 %v392, %v390
    %v431 = vpack.c.bf16 %v393, %v391
    %v432 = vpack.c.bf16 %v396, %v394
    %v433 = vpack.c.bf16 %v397, %v395
    %v434 = vpack.c.bf16 %v400, %v398
    %v435 = vpack.c.bf16 %v401, %v399
    %v436 = vpack.c.bf16 %v404, %v402
    %v437 = vpack.c.bf16 %v405, %v403
    %v438 = vpack.c.bf16 %v408, %v406
    %v439 = vpack.c.bf16 %v409, %v407
    %v440 = vpack.c.bf16 %v412, %v410
    %v441 = vpack.c.bf16 %v413, %v411
    %v442 = vpack.c.bf16 %v416, %v414
    %v443 = vpack.c.bf16 %v417, %v415
    %v444 = vpack.c.bf16 %v418, %v418
    %v445 = vpack.c.bf16 %v419, %v419
    %v446 = vld [vmem:[#allocation7] sm:$0xf]
    %v447 = vld [vmem:[#allocation7 + $0x4] sm:$0xf]
    %v448 = vld [vmem:[#allocation7 + $0x8] sm:$0xf]
    %v449 = vld [vmem:[#allocation7 + $0xc] sm:$0xf]
    %v450 = vld [vmem:[#allocation7 + $0x10] sm:$0xf]
    %v451 = vld [vmem:[#allocation7 + $0x14] sm:$0xf]
    %v452 = vld [vmem:[#allocation7 + $0x18] sm:$0xf]
    %v453 = vld [vmem:[#allocation7 + $0x1c] sm:$0xf]
    %v454 = vld [vmem:[#allocation7 + $0x20] sm:$0xf]
    %v455 = vld [vmem:[#allocation7 + $0x24] sm:$0xf]
    %v456 = vld [vmem:[#allocation7 + $0x28] sm:$0xf]
    %v457 = vld [vmem:[#allocation7 + $0x2c] sm:$0xf]
    %v458 = vld [vmem:[#allocation7 + $0x30] sm:$0xf]
    %v459 = vld [vmem:[#allocation7 + $0x34] sm:$0xf]
    %v460 = vld [vmem:[#allocation7 + $0x38] sm:$0xf]
    %v461 = vld [vmem:[#allocation7 + $0x3c] sm:$0xf]
    %v462 = vld [vmem:[#allocation7 + $0x40] sm:$0xf]
    %v463 = vld [vmem:[#allocation7 + $0x44] sm:$0xf]
    %v464 = vld [vmem:[#allocation7 + $0x48] sm:$0xf]
    %v465 = vld [vmem:[#allocation7 + $0x4c] sm:$0xf]
    %v466 = vld [vmem:[#allocation7 + $0x50] sm:$0xf]
    %v467 = vld [vmem:[#allocation7 + $0x54] sm:$0xf]
    %v468 = vld [vmem:[#allocation7 + $0x58] sm:$0xf]
    %v469 = vld [vmem:[#allocation7 + $0x5c] sm:$0xf]
    %v470 = vld [vmem:[#allocation7 + $0x60] sm:$0xf]
    %v471 = vld [vmem:[#allocation7 + $0x64] sm:$0xf]
    %v472 = vld [vmem:[#allocation7 + $0x68] sm:$0xf]
    %v473 = vld [vmem:[#allocation7 + $0x6c] sm:$0xf]
    %v474 = vld [vmem:[#allocation7 + $0x70] sm:$0xf]
    %v475 = vld [vmem:[#allocation7 + $0x74] sm:$0xf]
    %v476 = vld [vmem:[#allocation7 + $0x78] sm:$0xf]
    %v477 = vld [vmem:[#allocation7 + $0x7c] sm:$0xf]
    %v478 = vld [vmem:[%s4] sm:$0x1]
    %v480 = vlaneseq
    %v481 = vshrl.u32 %v480, 7
    %v482 = vsub.s32 0, %v481
    %v483 = vrot.slane %v478, %v482
    %v517 = vunpack.c.l.b16 %v446
    %v518 = vunpack.c.l.b16 %v447
    %v519 = vunpack.c.l.b16 %v448
    %v520 = vunpack.c.l.b16 %v449
    %v521 = vunpack.c.l.b16 %v450
    %v522 = vunpack.c.l.b16 %v451
    %v523 = vunpack.c.l.b16 %v452
    %v524 = vunpack.c.l.b16 %v453
    %v525 = vunpack.c.l.b16 %v454
    %v526 = vunpack.c.l.b16 %v455
    %v527 = vunpack.c.l.b16 %v456
    %v528 = vunpack.c.l.b16 %v457
    %v529 = vunpack.c.l.b16 %v458
    %v530 = vunpack.c.l.b16 %v459
    %v531 = vunpack.c.l.b16 %v460
    %v532 = vunpack.c.l.b16 %v461
    %v533 = vunpack.c.l.b16 %v462
    %v534 = vunpack.c.l.b16 %v463
    %v535 = vunpack.c.l.b16 %v464
    %v536 = vunpack.c.l.b16 %v465
    %v537 = vunpack.c.l.b16 %v466
    %v538 = vunpack.c.l.b16 %v467
    %v539 = vunpack.c.l.b16 %v468
    %v540 = vunpack.c.l.b16 %v469
    %v541 = vunpack.c.l.b16 %v470
    %v542 = vunpack.c.l.b16 %v471
    %v543 = vunpack.c.l.b16 %v472
    %v544 = vunpack.c.l.b16 %v473
    %v545 = vunpack.c.l.b16 %v474
    %v546 = vunpack.c.l.b16 %v475
    %v547 = vunpack.c.l.b16 %v476
    %v548 = vunpack.c.l.b16 %v477
    %v549 = vpack.c.b16 %v518, %v517
    %v550 = vpack.c.b16 %v520, %v519
    %v551 = vpack.c.b16 %v522, %v521
    %v552 = vpack.c.b16 %v524, %v523
    %v553 = vpack.c.b16 %v526, %v525
    %v554 = vpack.c.b16 %v528, %v527
    %v555 = vpack.c.b16 %v530, %v529
    %v556 = vpack.c.b16 %v532, %v531
    %v557 = vpack.c.b16 %v534, %v533
    %v558 = vpack.c.b16 %v536, %v535
    %v559 = vpack.c.b16 %v538, %v537
    %v560 = vpack.c.b16 %v540, %v539
    %v561 = vpack.c.b16 %v542, %v541
    %v562 = vpack.c.b16 %v544, %v543
    %v563 = vpack.c.b16 %v546, %v545
    %v564 = vpack.c.b16 %v548, %v547
    %581 = vmatprep.subr.bf16.mxu0 0
    %582 = vmatpush1.bf16.msra.mxu0 %v549
    %583 = vmatprep.subr.bf16.mxu0 0
    %584 = vmatpush1.bf16.msra.mxu0 %v550
    %585 = vmatprep.subr.bf16.mxu0 0
    %586 = vmatpush1.bf16.msra.mxu0 %v551
    %587 = vmatprep.subr.bf16.mxu0 0
    %588 = vmatpush1.bf16.msra.mxu0 %v552
    %589 = vmatprep.subr.bf16.mxu0 0
    %590 = vmatpush1.bf16.msra.mxu0 %v553
    %591 = vmatprep.subr.bf16.mxu0 0
    %592 = vmatpush1.bf16.msra.mxu0 %v554
    %593 = vmatprep.subr.bf16.mxu0 0
    %594 = vmatpush1.bf16.msra.mxu0 %v555
    %595 = vmatprep.subr.bf16.mxu0 0
    %596 = vmatpush1.bf16.msra.mxu0 %v556
    %597 = vmatprep.subr.bf16.mxu0 0
    %598 = vmatpush1.bf16.msra.mxu0 %v557
    %599 = vmatprep.subr.bf16.mxu0 0
    %600 = vmatpush1.bf16.msra.mxu0 %v558
    %601 = vmatprep.subr.bf16.mxu0 0
    %602 = vmatpush1.bf16.msra.mxu0 %v559
    %603 = vmatprep.subr.bf16.mxu0 0
    %604 = vmatpush1.bf16.msra.mxu0 %v560
    %605 = vmatprep.subr.bf16.mxu0 0
    %606 = vmatpush1.bf16.msra.mxu0 %v561
    %607 = vmatprep.subr.bf16.mxu0 0
    %608 = vmatpush1.bf16.msra.mxu0 %v562
    %609 = vmatprep.subr.bf16.mxu0 0
    %610 = vmatpush1.bf16.msra.mxu0 %v563
    %611 = vmatprep.subr.bf16.mxu0 0
    %612 = vmatpush1.bf16.msra.mxu0 %v564
    %613 = vmatprep.mubr.bf16.mxu0 %v421
    %614 = vmatmul.mubr.bf16.gmra.mrb[0].mxu0 %v420
    %v615 = vpop.f32.mrb[0].mxu0
    %v616 = vadd.f32 %v483, %v615
    %v617 = vpop.f32.mrb[0].mxu0
    %v618 = vpop.f32.mrb[0].mxu0
    %v619 = vadd.f32 %v483, %v618
    %v620 = vpop.f32.mrb[0].mxu0
    %621 = vmatprep.mubr.bf16.mxu0 %v423
    %622 = vmatmul.mubr.bf16.gmra.mrb[0].mxu0 %v422
    %v623 = vpop.f32.mrb[0].mxu0
    %v624 = vadd.f32 %v483, %v623
    %v625 = vpop.f32.mrb[0].mxu0
    %v626 = vpop.f32.mrb[0].mxu0
    %v627 = vadd.f32 %v483, %v626
    %v628 = vpop.f32.mrb[0].mxu0
    %629 = vmatprep.mubr.bf16.mxu0 %v425
    %630 = vmatmul.mubr.bf16.gmra.mrb[0].mxu0 %v424
    %v631 = vpop.f32.mrb[0].mxu0
    %v632 = vadd.f32 %v483, %v631
    %v633 = vpop.f32.mrb[0].mxu0
    %v634 = vpop.f32.mrb[0].mxu0
    %v635 = vadd.f32 %v483, %v634
    %v636 = vpop.f32.mrb[0].mxu0
    %637 = vmatprep.mubr.bf16.mxu0 %v427
    %638 = vmatmul.mubr.bf16.gmra.mrb[0].mxu0 %v426
    %v639 = vpop.f32.mrb[0].mxu0
    %v640 = vadd.f32 %v483, %v639
    %v641 = vpop.f32.mrb[0].mxu0
    %v642 = vpop.f32.mrb[0].mxu0
    %v643 = vadd.f32 %v483, %v642
    %v644 = vpop.f32.mrb[0].mxu0
    %645 = vmatprep.mubr.bf16.mxu0 %v429
    %646 = vmatmul.mubr.bf16.gmra.mrb[0].mxu0 %v428
    %v647 = vpop.f32.mrb[0].mxu0
    %v648 = vadd.f32 %v483, %v647
    %v649 = vpop.f32.mrb[0].mxu0
    %v650 = vpop.f32.mrb[0].mxu0
    %v651 = vadd.f32 %v483, %v650
    %v652 = vpop.f32.mrb[0].mxu0
    %653 = vmatprep.mubr.bf16.mxu0 %v431
    %654 = vmatmul.mubr.bf16.gmra.mrb[0].mxu0 %v430
    %v655 = vpop.f32.mrb[0].mxu0
    %v656 = vadd.f32 %v483, %v655
    %v657 = vpop.f32.mrb[0].mxu0
    %v658 = vpop.f32.mrb[0].mxu0
    %v659 = vadd.f32 %v483, %v658
    %v660 = vpop.f32.mrb[0].mxu0
    %661 = vmatprep.mubr.bf16.mxu0 %v433
    %662 = vmatmul.mubr.bf16.gmra.mrb[0].mxu0 %v432
    %v663 = vpop.f32.mrb[0].mxu0
    %v664 = vadd.f32 %v483, %v663
    %v665 = vpop.f32.mrb[0].mxu0
    %v666 = vpop.f32.mrb[0].mxu0
    %v667 = vadd.f32 %v483, %v666
    %v668 = vpop.f32.mrb[0].mxu0
    %669 = vmatprep.mubr.bf16.mxu0 %v435
    %670 = vmatmul.mubr.bf16.gmra.mrb[0].mxu0 %v434
    %v671 = vpop.f32.mrb[0].mxu0
    %v672 = vadd.f32 %v483, %v671
    %v673 = vpop.f32.mrb[0].mxu0
    %v674 = vpop.f32.mrb[0].mxu0
    %v675 = vadd.f32 %v483, %v674
    %v676 = vpop.f32.mrb[0].mxu0
    %677 = vmatprep.mubr.bf16.mxu0 %v437
    %678 = vmatmul.mubr.bf16.gmra.mrb[0].mxu0 %v436
    %v679 = vpop.f32.mrb[0].mxu0
    %v680 = vadd.f32 %v483, %v679
    %v681 = vpop.f32.mrb[0].mxu0
    %v682 = vpop.f32.mrb[0].mxu0
    %v683 = vadd.f32 %v483, %v682
    %v684 = vpop.f32.mrb[0].mxu0
    %685 = vmatprep.mubr.bf16.mxu0 %v439
    %686 = vmatmul.mubr.bf16.gmra.mrb[0].mxu0 %v438
    %v687 = vpop.f32.mrb[0].mxu0
    %v688 = vadd.f32 %v483, %v687
    %v689 = vpop.f32.mrb[0].mxu0
    %v690 = vpop.f32.mrb[0].mxu0
    %v691 = vadd.f32 %v483, %v690
    %v692 = vpop.f32.mrb[0].mxu0
    %693 = vmatprep.mubr.bf16.mxu0 %v441
    %694 = vmatmul.mubr.bf16.gmra.mrb[0].mxu0 %v440
    %v695 = vpop.f32.mrb[0].mxu0
    %v696 = vadd.f32 %v483, %v695
    %v697 = vpop.f32.mrb[0].mxu0
    %v698 = vpop.f32.mrb[0].mxu0
    %v699 = vadd.f32 %v483, %v698
    %v700 = vpop.f32.mrb[0].mxu0
    %701 = vmatprep.mubr.bf16.mxu0 %v443
    %702 = vmatmul.mubr.bf16.gmra.mrb[0].mxu0 %v442
    %v703 = vpop.f32.mrb[0].mxu0
    %v704 = vadd.f32 %v483, %v703
    %v705 = vpop.f32.mrb[0].mxu0
    %v706 = vpop.f32.mrb[0].mxu0
    %v707 = vadd.f32 %v483, %v706
    %v708 = vpop.f32.mrb[0].mxu0
    %709 = vmatprep.mubr.bf16.mxu0 %v445
    %710 = vmatmul.mubr.bf16.gmra.mrb[0].mxu0 %v444
    %v711 = vpop.f32.mrb[0].mxu0
    %v712 = vadd.f32 %v483, %v711
    %v713 = vpop.f32.mrb[0].mxu0
    %v714 = vpop.f32.mrb[0].mxu0
    %v715 = vpop.f32.mrb[0].mxu0
    %716 = vdwg.mxu0
    %717 = vst [vmem:[#allocation8] sm:$0xff] %v616
    %718 = vst [vmem:[#allocation8 + $0x8] sm:$0xff] %v619
    %719 = vst [vmem:[#allocation8 + $0x10] sm:$0xff] %v624
    %720 = vst [vmem:[#allocation8 + $0x18] sm:$0xff] %v627
    %721 = vst [vmem:[#allocation8 + $0x20] sm:$0xff] %v632
    %722 = vst [vmem:[#allocation8 + $0x28] sm:$0xff] %v635
    %723 = vst [vmem:[#allocation8 + $0x30] sm:$0xff] %v640
    %724 = vst [vmem:[#allocation8 + $0x38] sm:$0xff] %v643
    %725 = vst [vmem:[#allocation8 + $0x40] sm:$0xff] %v648
    %726 = vst [vmem:[#allocation8 + $0x48] sm:$0xff] %v651
    %727 = vst [vmem:[#allocation8 + $0x50] sm:$0xff] %v656
    %728 = vst [vmem:[#allocation8 + $0x58] sm:$0xff] %v659
    %729 = vst [vmem:[#allocation8 + $0x60] sm:$0xff] %v664
    %730 = vst [vmem:[#allocation8 + $0x68] sm:$0xff] %v667
    %731 = vst [vmem:[#allocation8 + $0x70] sm:$0xff] %v672
    %732 = vst [vmem:[#allocation8 + $0x78] sm:$0xff] %v675
    %733 = vst [vmem:[#allocation8 + $0x80] sm:$0xff] %v680
    %734 = vst [vmem:[#allocation8 + $0x88] sm:$0xff] %v683
    %735 = vst [vmem:[#allocation8 + $0x90] sm:$0xff] %v688
    %736 = vst [vmem:[#allocation8 + $0x98] sm:$0xff] %v691
    %737 = vst [vmem:[#allocation8 + $0xa0] sm:$0xff] %v696
    %738 = vst [vmem:[#allocation8 + $0xa8] sm:$0xff] %v699
    %739 = vst [vmem:[#allocation8 + $0xb0] sm:$0xff] %v704
    %740 = vst [vmem:[#allocation8 + $0xb8] sm:$0xff] %v707
    %741 = vst [vmem:[#allocation8 + $0xc0] sm:$0xff] %v712
    // Predicated region
    $region34: #{resmlp_forward.1} parent=1 // pred_check
      _
    $region35: #{resmlp_forward.1} parent=1 // pred_check_branch
      %743 = sbr.rel (0) target = $region37
    $region36: #{resmlp_forward.1} parent=1 // pred_region
      %s745 = ssub.s32 3200, 3200
      %746 = vsyncadd [#allocation4], %s745
      %s747 = sshll.u32 [#allocation8], 4
      %s748 = int_to_ptr.vmem [resolvable:$true] %s747
      %753 = dma.vmem_to_hbm [thread:$0]  %s748, 3200, %s5, [#allocation4], 128, 128, 8
    $region37: #{resmlp_forward.1} parent=1 // pred_fallthru
      _
    // Predicated region
    $region38: #{resmlp_forward.1} parent=1 // pred_check
      _
    $region39: #{resmlp_forward.1} parent=1 // pred_check_branch
      %755 = sbr.rel (0) target = $region41
    $region40: #{resmlp_forward.1} parent=1 // pred_region
      %756 = dma.done [#allocation4], 3200
    $region41: #{resmlp_forward.1} parent=1 // pred_fallthru
      _
    %757 = vsyncpa [#allocation3], 1
    %758 = vsyncpa [#allocation6], 1
    %759 = vsyncpa [#allocation4], 1

</llo_original>
